<compile_context>
chip_gen: v5e
topology: v5e:2x2
jax: 0.10.0
libtpu: 0.0.40
codegen_flags: <defaults>
</compile_context>

<pallas_src>
import functools

import jax
import jax.numpy as jnp
from jax import lax
from jax.experimental import pallas as pl
from jax.experimental.pallas import tpu as pltpu


def _round_up(x, m):
    return ((x + m - 1) // m) * m


def _pick_tile(two_b):
    """Row-tile size (queries per grid step)."""
    if two_b <= 512:
        return _round_up(two_b, 8)       # single tile covering all (padded) rows
    for cand in (512, 256, 128):
        if two_b % cand == 0:
            return cand
    return 128                            # pad-and-mask path, minimal padding waste


def _ntxent_kernel(feat_ref, out_ref, *, inv_temp, batch_size, two_b, tile_m):
    """Per-tile NT-Xent contributions.

    feat_ref: (2B_pad, D_pad) pre-normalized bf16 features (resident block).
    out_ref : (1, tile_m) f32 per-query-row contributions lse_r - sim[r,pos(r)]/T.
    """
    row_start = pl.multiple_of(pl.program_id(0) * tile_m, 8)

    # Query rows for this step, sliced out of the resident block (bf16).
    rows = feat_ref[pl.ds(row_start, tile_m), :]                     # (tile_m, D_pad)

    # sim[key, query] = <feat[key], rows[query]> / T.
    # bf16 operands -> MXU native; f32 accumulation; 1/T applied post-matmul in f32.
    sim = lax.dot_general(
        feat_ref[...], rows,
        dimension_numbers=(((1,), (1,)), ((), ())),
        preferred_element_type=jnp.float32,
    ) * inv_temp                                                     # (2B_pad, tile_m)

    key_ids = lax.broadcasted_iota(jnp.int32, sim.shape, 0)          # key row index
    q_ids = row_start + lax.broadcasted_iota(jnp.int32, sim.shape, 1)  # global query row

    # Positive logit per query row, taken from the same f32 tile
    # (positive partner of row r is row (r + B) mod 2B).
    partner = lax.rem(q_ids + batch_size, two_b)
    pos = jnp.sum(jnp.where(key_ids == partner, sim, 0.0),
                  axis=0, keepdims=True)                             # (1, tile_m)

    # Mask padded key rows out of the denominator, then max-subtracted logsumexp
    # over the sublane (key) axis -> lane-dense (1, tile_m) result.
    sim = jnp.where(key_ids < two_b, sim, -jnp.inf)
    m = jnp.max(sim, axis=0, keepdims=True)
    lse = m + jnp.log(jnp.sum(jnp.exp(sim - m), axis=0, keepdims=True))

    out_ref[...] = lse - pos


def contrastive_loss(z1, z2, labels=None, temperature: float = 0.07):
    """NT-Xent / InfoNCE loss. z1, z2: (B, D). `labels` unused (API parity)."""
    assert z1.shape == z2.shape and z1.ndim == 2
    batch_size, dim = z1.shape
    two_b = 2 * batch_size
    eps = 1e-12  # F.normalize default eps

    # One-time prep in the wrapper (hoisted out of the per-tile body):
    # concat, L2-normalize in f32, pad to (8,128)-friendly shapes, cast to bf16.
    feat = jnp.concatenate([z1, z2], axis=0).astype(jnp.float32)
    norm = jnp.sqrt(jnp.sum(feat * feat, axis=1, keepdims=True))
    feat = feat / jnp.maximum(norm, eps)

    tile_m = _pick_tile(two_b)
    d_pad = _round_up(dim, 128)
    two_b_pad = _round_up(two_b, tile_m)
    num_tiles = two_b_pad // tile_m

    feat = jnp.pad(feat, ((0, two_b_pad - two_b), (0, d_pad - dim)))
    feat = feat.astype(jnp.bfloat16)   # resident block: bf16 halves DMA bytes & VMEM

    kernel = functools.partial(
        _ntxent_kernel,
        inv_temp=1.0 / float(temperature),
        batch_size=batch_size,
        two_b=two_b,
        tile_m=tile_m,
    )

    # Explicit VMEM budget: bf16 resident block (x2 for pipeline buffers; the
    # constant index_map means it is not re-fetched across steps) + f32 sim tile
    # and temporaries.  Capped at 64 MiB (v7x physical per-TC VMEM).
    feat_bytes = two_b_pad * d_pad * 2
    sim_bytes = two_b_pad * tile_m * 4
    vmem_limit = int(min(max(2 * feat_bytes + 6 * sim_bytes + (2 << 20), 16 << 20),
                         64 << 20))

    out = pl.pallas_call(
        kernel,
        grid=(num_tiles,),
        in_specs=[
            # Full pre-normalized bf16 feature block, resident across the grid.
            pl.BlockSpec((two_b_pad, d_pad), lambda i: (0, 0)),
        ],
        # Lane-dense per-row contributions: (1, tile_m) blocks of a (1, 2B_pad) row.
        out_specs=pl.BlockSpec((1, tile_m), lambda i: (0, i)),
        out_shape=jax.ShapeDtypeStruct((1, two_b_pad), jnp.float32),
        compiler_params=pltpu.CompilerParams(
            dimension_semantics=("parallel",),   # megacore-shardable on v7x
            vmem_limit_bytes=vmem_limit,
        ),
    )(feat)

    # Drop padded query rows and do the tiny final reduction in the wrapper.
    per_row = out[0, :two_b]
    return jnp.sum(per_row) / two_b


def _reference_loss(z1, z2, temperature=0.07):
    # Pure-JAX f32 reference mirroring the PyTorch module.
    eps = 1e-12
    z1n = z1 / jnp.maximum(jnp.linalg.norm(z1, axis=1, keepdims=True), eps)
    z2n = z2 / jnp.maximum(jnp.linalg.norm(z2, axis=1, keepdims=True), eps)
    b = z1.shape[0]
    f = jnp.concatenate([z1n, z2n], axis=0)
    sim = jnp.matmul(f, f.T, precision=lax.Precision.HIGHEST) / temperature
    pos_mask = jnp.zeros((2 * b, 2 * b), jnp.float32)
    pos_mask = pos_mask.at[:b, b:].set(jnp.eye(b))
    pos_mask = pos_mask.at[b:, :b].set(jnp.eye(b))
    log_prob = sim - jnp.log(jnp.sum(jnp.exp(sim), axis=1, keepdims=True))
    return -jnp.sum(pos_mask * log_prob) / (2 * b)


if __name__ == "__main__":
    key = jax.random.PRNGKey(0)
    k1, k2, k3, k4 = jax.random.split(key, 4)

    # Small shape (single row tile).
    B, D = 8, 32
    z1 = jax.random.normal(k1, (B, D), dtype=jnp.float32)
    z2 = jax.random.normal(k2, (B, D), dtype=jnp.float32)
    labels = jnp.arange(B, dtype=jnp.int32)   # unused in the loss, kept for parity

    loss = jax.block_until_ready(contrastive_loss(z1, z2, labels, temperature=0.07))
    ref = _reference_loss(z1, z2, temperature=0.07)
    # bf16 MXU operands (f32 accumulate) -> loosen tolerance vs. the f32 reference.
    assert jnp.allclose(loss, ref, rtol=2e-2, atol=2e-2), (loss, ref)

    # Multi-tile path: 2B=600 -> tile_m=128, rows padded to 640 (pad-and-mask).
    B2, D2 = 300, 96
    w1 = jax.random.normal(k3, (B2, D2), dtype=jnp.float32)
    w2 = jax.random.normal(k4, (B2, D2), dtype=jnp.float32)
    loss2 = jax.block_until_ready(contrastive_loss(w1, w2, None, temperature=0.07))
    ref2 = _reference_loss(w1, w2, temperature=0.07)
    assert jnp.allclose(loss2, ref2, rtol=2e-2, atol=2e-2), (loss2, ref2)

    print("KERNEL_OK")
</pallas_src>

<mosaic_0001>
module attributes {stable_mosaic.version = 11 : i64} {
  func.func @_ntxent_kernel(%arg0: i32, %arg1: memref<16x128xbf16, #tpu.memory_space<vmem>>, %arg2: memref<1x16xf32, #tpu.memory_space<vmem>>) attributes {dimension_semantics = [#tpu.dimension_semantics<parallel>], iteration_bounds = array<i64: 1>, scalar_prefetch = 0 : i64, scratch_operands = 0 : i64, tpu.core_type = #tpu.core_type<tc>, window_params = [{pipeline_mode = #tpu.pipeline_mode<synchronous>, transform_indices = @transform_0, window_bounds = array<i64: 16, 128>}, {transform_indices = @transform_1, window_bounds = array<i64: 1, 16>}]} {
    %c16_i32 = arith.constant 16 : i32
    %0 = arith.muli %arg0, %c16_i32 : i32
    %1 = tpu.assume_multiple %0, 8 : i32
    %2 = arith.index_cast %1 : i32 to index
    %c0 = arith.constant 0 : index
    %3 = vector.load %arg1[%2, %c0] : memref<16x128xbf16, #tpu.memory_space<vmem>>, vector<16x128xbf16>
    %c0_0 = arith.constant 0 : index
    %c0_1 = arith.constant 0 : index
    %4 = vector.load %arg1[%c0_0, %c0_1] : memref<16x128xbf16, #tpu.memory_space<vmem>>, vector<16x128xbf16>
    %cst = arith.constant dense<0.000000e+00> : vector<16x16xf32>
    %5 = tpu.matmul %4, %3, %cst {dimension_numbers = #tpu.dot_dimension_numbers<[1], [1], [0], [0], [0, 0, 1, 0], [], []>} : vector<16x128xbf16>, vector<16x128xbf16>, vector<16x16xf32> -> vector<16x16xf32>
    %cst_2 = arith.constant 14.2857141 : f32
    %6 = vector.broadcast %cst_2 : f32 to vector<16x16xf32>
    %7 = arith.mulf %5, %6 : vector<16x16xf32>
    %8 = tpu.iota {dimensions = array<i32: 0>} : vector<16x16xi32>
    %9 = tpu.iota {dimensions = array<i32: 1>} : vector<16x16xi32>
    %10 = vector.broadcast %1 : i32 to vector<16x16xi32>
    %11 = arith.addi %10, %9 : vector<16x16xi32>
    %c8_i32 = arith.constant 8 : i32
    %12 = vector.broadcast %c8_i32 : i32 to vector<16x16xi32>
    %13 = arith.addi %11, %12 : vector<16x16xi32>
    %c16_i32_3 = arith.constant 16 : i32
    %14 = vector.broadcast %c16_i32_3 : i32 to vector<16x16xi32>
    %15 = arith.remsi %13, %14 : vector<16x16xi32>
    %16 = arith.cmpi eq, %8, %15 : vector<16x16xi32>
    %cst_4 = arith.constant 0.000000e+00 : f32
    %17 = vector.broadcast %cst_4 : f32 to vector<16x16xf32>
    %18 = arith.select %16, %7, %17 : vector<16x16xi1>, vector<16x16xf32>
    %cst_5 = arith.constant dense<0.000000e+00> : vector<16xf32>
    %19 = vector.multi_reduction <add>, %18, %cst_5 [0] : vector<16x16xf32> to vector<16xf32>
    %20 = vector.shape_cast %19 : vector<16xf32> to vector<1x16xf32>
    %c16_i32_6 = arith.constant 16 : i32
    %21 = vector.broadcast %c16_i32_6 : i32 to vector<16x16xi32>
    %22 = arith.cmpi slt, %8, %21 : vector<16x16xi32>
    %cst_7 = arith.constant 0xFF800000 : f32
    %23 = vector.broadcast %cst_7 : f32 to vector<16x16xf32>
    %24 = arith.select %22, %7, %23 : vector<16x16xi1>, vector<16x16xf32>
    %cst_8 = arith.constant dense<0xFF800000> : vector<16xf32>
    %25 = vector.multi_reduction <maximumf>, %24, %cst_8 [0] : vector<16x16xf32> to vector<16xf32>
    %26 = vector.shape_cast %25 : vector<16xf32> to vector<1x16xf32>
    %27 = vector.broadcast %26 : vector<1x16xf32> to vector<16x16xf32>
    %28 = arith.subf %24, %27 : vector<16x16xf32>
    %29 = math.exp %28 : vector<16x16xf32>
    %cst_9 = arith.constant dense<0.000000e+00> : vector<16xf32>
    %30 = vector.multi_reduction <add>, %29, %cst_9 [0] : vector<16x16xf32> to vector<16xf32>
    %31 = vector.shape_cast %30 : vector<16xf32> to vector<1x16xf32>
    %32 = math.log %31 : vector<1x16xf32>
    %33 = arith.addf %26, %32 : vector<1x16xf32>
    %34 = arith.subf %33, %20 : vector<1x16xf32>
    %c0_10 = arith.constant 0 : index
    %c0_11 = arith.constant 0 : index
    %35 = vector.load %arg2[%c0_10, %c0_11] : memref<1x16xf32, #tpu.memory_space<vmem>>, vector<1x16xf32>
    tpu.vector_store %arg2[%c0_10, %c0_11], %34 {strides = array<i32>} : memref<1x16xf32, #tpu.memory_space<vmem>>, vector<1x16xf32>,
    return
  }
  func.func @transform_0(%arg0: i32) -> (i32, i32) {
    %c0_i32 = arith.constant 0 : i32
    %c0_i32_0 = arith.constant 0 : i32
    %c0_i32_1 = arith.constant 0 : i32
    return %c0_i32, %c0_i32_0 : i32, i32
  }
  func.func @transform_1(%arg0: i32) -> (i32, i32) {
    %c0_i32 = arith.constant 0 : i32
    %c0_i32_0 = arith.constant 0 : i32
    return %c0_i32, %arg0 : i32, i32
  }
}

</mosaic_0001>

<llo_original>
// kernel: tpu_custom_call.1
$region0: #{tpu_custom_call.1}
  #allocation0 [shape = 'u32[]', space=smem, size = 0x4, offset = 0x4, fixed_abs, tag = 'smem constant byte address 0x4 - core index']
  #allocation1 [shape = 'u32[72,128]{1,0:T(1,128)}', space=vmem, size = 0x9000, scoped, tag = 'internal scratch']
  %s0 = inlined_call_operand.hbm [shape: bf16[16,128], index: 0, kind: input, shape index: {}]
  %s1 = inlined_call_operand.hbm [shape: f32[1,16], index: 1, kind: output, shape index: {}]
  %s2 = sld [smem:[#allocation0]]
  $region18: #{tpu_custom_call.1} parent=0
    _
  %s4 = ssub.s32 1, %s2
  %s5 = scalar_select 0, %s4, %s2
  $region1: #{tpu_custom_call.1} parent=0
    #allocation2 [shape = 'u8[4096]{0}', space=vmem, size = 0x1000, scoped, tag = 'input window, operand 0, single buffered']
    #allocation3 [shape = 's32[1]{0}', space=sflag, size = 0x4, scoped, tag = 'scoped memory for tpu_custom_call.1']
    #allocation4 [shape = 's32[1]{0}', space=sflag, size = 0x4, scoped, tag = 'scoped memory for tpu_custom_call.1']
    #allocation5 [shape = 'u8[512]{0}', space=vmem, size = 0x400, scoped, tag = 'output window, operand 0, single buffered']
    %6 = vsyncpa [#allocation3], 0
    %7 = vsyncpa [#allocation4], 0
    // Predicated region
    $region2: #{tpu_custom_call.1} parent=1 // pred_check
      _
    $region3: #{tpu_custom_call.1} parent=1 // pred_check_branch
      %9 = sbr.rel (0) target = $region5
    $region4: #{tpu_custom_call.1} parent=1 // pred_region
      %11 = vsyncadd [#allocation3], 0
      %s12 = sshll.u32 %s0, 4
      %s13 = int_to_ptr.hbm [resolvable:$true] %s12
      %s14 = sshll.u32 [#allocation2], 4
      %s15 = int_to_ptr.vmem [resolvable:$true] %s14
      %20 = dma.hbm_to_vmem [thread:$0]  %s13, 128, %s15, [#allocation3], 64, 64, 4
    $region5: #{tpu_custom_call.1} parent=1 // pred_fallthru
      _
    // Predicated region
    $region6: #{tpu_custom_call.1} parent=1 // pred_check
      _
    $region7: #{tpu_custom_call.1} parent=1 // pred_check_branch
      %22 = sbr.rel (0) target = $region9
    $region8: #{tpu_custom_call.1} parent=1 // pred_region
      %24 = dma.done [#allocation3], 128
    $region9: #{tpu_custom_call.1} parent=1 // pred_fallthru
      _
    %s26 = smul.u32 0, 16
    %s27 = sshra.s32 %s26, 3
    %s28 = sand.u32 %s26, 7
    %s29 = smul.addr %s27, 4
    %s30 = scalar_lea.vmem [#allocation2], %s29
    %v31 = vld [vmem:[%s30] sm:$0xf]
    %v32 = vld [vmem:[%s30 + $0x4] sm:$0xf]
    %v33 = vld [vmem:[#allocation2] sm:$0xf]
    %v34 = vld [vmem:[#allocation2 + $0x4] sm:$0xf]
    %v37 = vunpack.c.l.b16 %v33
    %v38 = vunpack.c.l.b16 %v34
    %v39 = vpack.c.b16 %v38, %v37
    %v43 = vunpack.c.l.b16 %v31
    %v44 = vunpack.c.l.b16 %v32
    %v45 = vpack.c.b16 %v44, %v43
    %47 = vmatpush.bf16.xpose.msra.mxu0 0
    %48 = vmatpush.bf16.xpose.msra.mxu0 0
    %49 = vmatpush.bf16.xpose.msra.mxu0 0
    %50 = vmatpush.bf16.xpose.msra.mxu0 0
    %51 = vmatpush.bf16.xpose.msra.mxu0 0
    %52 = vmatpush.bf16.xpose.msra.mxu0 0
    %53 = vmatpush.bf16.xpose.msra.mxu0 0
    %54 = vmatpush.bf16.xpose.msra.mxu0 %v45
    %55 = vmatmul.bf16.gmra.mxu0 %v39
    %v56 = vpop.f32.mrf.mxu0
    %v57 = vadd.f32 0.0, %v56
    %v58 = vpop.f32.mrf.mxu0
    %v59 = vadd.f32 0.0, %v58
    %60 = vdwg.mxu0
    %v61 = vmul.f32 %v57, 14.285714
    %v62 = vmul.f32 %v59, 14.285714
    %v63 = vlaneseq
    %v64 = vshrl.u32 %v63, 7
    %v65 = vadd.s32 %v64, 8
    %v66 = vlaneseq
    %v67 = vand.u32 %v66, 127
    %v68 = vstv %s26
    %v69 = vadd.s32 %v68, %v67
    %v70 = vadd.s32 %v69, 8
    %vm71 = vcmp.lt.s32.totalorder %v70, 0
    %v72 = vsub.s32 0, %v70
    %v73 = vsel %vm71, %v72, %v70
    %v74 = vshrl.u32 %v73, 4
    %v75 = vand.u32 %v73, 15
    %v76 = vsub.s32 0, %v75
    %v77 = vsel %vm71, %v76, %v75
    %vm78 = vcmp.eq.s32.totalorder %v64, %v77
    %vm79 = vcmp.eq.s32.totalorder %v65, %v77
    %v80 = vsel %vm78, %v61, 0.0
    %v81 = vsel %vm79, %v62, 0.0
    %vm82 = vcmask 130048
    %v83 = vsel %vm82, %v80, 0.0
    %v84 = vsel %vm82, %v81, 0.0
    %v85 = vadd.f32 %v83, %v84
    %v86 = vrot.slane %v85, 4
    %v87 = vadd.f32 %v85, %v86
    %v88 = vrot.slane %v87, 2
    %v89 = vadd.f32 %v87, %v88
    %v90 = vrot.slane %v89, 1
    %v91 = vadd.f32 %v89, %v90
    %vm92 = vcmp.lt.s32.totalorder %v64, 16
    %vm93 = vcmp.lt.s32.totalorder %v65, 16
    %v94 = vsel %vm92, %v61, -inf
    %v95 = vsel %vm93, %v62, -inf
    %v96 = vsel %vm82, %v94, -inf
    %v97 = vsel %vm82, %v95, -inf
    %v98 = vmax.f32 %v96, %v97
    %v99 = vrot.slane %v98, 4
    %v100 = vmax.f32 %v98, %v99
    %v101 = vrot.slane %v100, 2
    %v102 = vmax.f32 %v100, %v101
    %v103 = vrot.slane %v102, 1
    %v104 = vmax.f32 %v102, %v103
    %v105 = vsub.f32 %v94, %v104
    %v106 = vsub.f32 %v95, %v104
    %v107 = vmul.f32 %v105, 1.442695
    %v108 = vpow.pop %v107
    %v109 = vmul.f32 %v106, 1.442695
    %v110 = vpow.pop %v109
    %v111 = vsel %vm82, %v108, 0.0
    %v112 = vsel %vm82, %v110, 0.0
    %v113 = vadd.f32 %v111, %v112
    %v114 = vrot.slane %v113, 4
    %v115 = vadd.f32 %v113, %v114
    %v116 = vrot.slane %v115, 2
    %v117 = vadd.f32 %v115, %v116
    %v118 = vrot.slane %v117, 1
    %v119 = vadd.f32 %v117, %v118
    %v120 = vlog2.pop %v119
    %v121 = vmul.f32 %v120, 0.6931472
    %v122 = vadd.f32 %v104, %v121
    %v123 = vsub.f32 %v122, %v91
    %vm124 = vcmask 122880
    %125 = vst.msk [vmem:[#allocation5] sm:$0x1] %vm124, %v123
    // Predicated region
    $region10: #{tpu_custom_call.1} parent=1 // pred_check
      _
    $region11: #{tpu_custom_call.1} parent=1 // pred_check_branch
      %127 = sbr.rel (0) target = $region13
    $region12: #{tpu_custom_call.1} parent=1 // pred_region
      %129 = vsyncadd [#allocation4], 0
      %s131 = sshll.u32 [#allocation5], 4
      %s132 = int_to_ptr.vmem [resolvable:$true] %s131
      %s133 = sshll.u32 %s1, 4
      %s134 = int_to_ptr.hbm [resolvable:$true] %s133
      %136 = dma.vmem_to_hbm [thread:$0]  %s132, 16, %s134, [#allocation4]
    $region13: #{tpu_custom_call.1} parent=1 // pred_fallthru
      _
    // Predicated region
    $region14: #{tpu_custom_call.1} parent=1 // pred_check
      _
    $region15: #{tpu_custom_call.1} parent=1 // pred_check_branch
      %138 = sbr.rel (0) target = $region17
    $region16: #{tpu_custom_call.1} parent=1 // pred_region
      %140 = dma.done [#allocation4], 16
    $region17: #{tpu_custom_call.1} parent=1 // pred_fallthru
      _
    %141 = vsyncpa [#allocation3], 1
    %142 = vsyncpa [#allocation4], 1

</llo_original>
